<compile_context>
chip_gen: v6e
topology: v6e:2x2x1
jax: 0.10.0
libtpu: 0.0.40
codegen_flags: <defaults>
</compile_context>

<pallas_src>
import functools

import jax
import jax.numpy as jnp
import numpy as np
from jax import lax
from jax.experimental import pallas as pl
from jax.experimental.pallas import tpu as pltpu


def _triplet_kernel(f_ref, labels_col_ref, labels_row2_ref, out_ref, *, margin):
    # eps^2 with eps = 1e-8 (matches F.cosine_similarity's per-norm clamp:
    # 1 / max(||x||, eps) == rsqrt(max(||x||^2, eps^2)) ).
    eps2 = jnp.float32(1e-16)

    a = f_ref[0]  # (B, D) float32 anchors
    p = f_ref[1]  # (B, D) positives
    n = f_ref[2]  # (B, D) negatives
    B = a.shape[0]

    inv_a = lax.rsqrt(jnp.maximum(jnp.sum(a * a, axis=-1, keepdims=True), eps2))
    inv_p = lax.rsqrt(jnp.maximum(jnp.sum(p * p, axis=-1, keepdims=True), eps2))
    inv_n = lax.rsqrt(jnp.maximum(jnp.sum(n * n, axis=-1, keepdims=True), eps2))
    a_hat = a * inv_a
    p_hat = p * inv_p
    n_hat = n * inv_n

    # Per-row (i, i) pairs, kept fully in f32:
    #   sum_i (1 - cos(a_i, p_i)) and sum_i (1 - cos(a_i, n_i)).
    d_ap_sum = jnp.float32(B) - jnp.sum(a_hat * p_hat)
    d_an_sum = jnp.float32(B) - jnp.sum(a_hat * n_hat)

    # Fused pairwise cosine matmul on the MXU:
    #   (B, D) . [a_hat ; n_hat]^T  ->  (B, 2B), bf16 operands, f32 accumulation.
    rhs = jnp.concatenate([a_hat, n_hat], axis=0)  # (2B, D)
    cos = lax.dot_general(
        a_hat.astype(jnp.bfloat16),
        rhs.astype(jnp.bfloat16),
        dimension_numbers=(((1,), (1,)), ((), ())),
        preferred_element_type=jnp.float32,
    )  # (B, 2B): cols [0, B) are cos(a_i, a_j); cols [B, 2B) are cos(a_i, n_j)

    # Masks over the fused (B, 2B) layout.
    row = lax.broadcasted_iota(jnp.int32, (B, 2 * B), 0)
    col = lax.broadcasted_iota(jnp.int32, (B, 2 * B), 1)
    col_in_blk = jnp.where(col < B, col, col - B)
    upper = col_in_blk > row                                    # strict j > i per block
    same = labels_col_ref[...] == labels_row2_ref[...]          # (B,1)==(1,2B) -> (B,2B)
    pos_mask = jnp.logical_and(upper, same)

    # Only the pos-masked reductions are computed; the neg side is derived from
    # compile-time constants (complementary-mask algebra).
    cos_upper_sum = jnp.sum(jnp.where(upper, cos, 0.0))
    cos_pos_sum = jnp.sum(jnp.where(pos_mask, cos, 0.0))
    pos_pair_cnt = jnp.sum(pos_mask.astype(jnp.float32))

    total_pairs = jnp.float32(B * (B - 1))          # strict-upper pairs across both blocks
    neg_pair_cnt = total_pairs - pos_pair_cnt
    cos_neg_sum = cos_upper_sum - cos_pos_sum

    # sum over masked pairs of (1 - cos) = count - sum(cos); never materialize d matrices.
    pos_sum = d_ap_sum + (pos_pair_cnt - cos_pos_sum)
    neg_sum = d_an_sum + (neg_pair_cnt - cos_neg_sum)
    pos_cnt = jnp.float32(B) + pos_pair_cnt
    neg_cnt = jnp.float32(B) + neg_pair_cnt

    loss = jnp.maximum(
        pos_sum / pos_cnt - neg_sum / neg_cnt + jnp.float32(margin), 0.0
    )
    out_ref[0, 0] = loss


def triplet_loss(features, labels, neg_labels, *, triplet_margin=5.0):
    """Pallas implementation of TripletLoss.forward (cosine distance, in-batch sup)."""
    B, three, D = features.shape
    assert three == 3

    # One contiguous feature operand: (3, B, D) so the kernel can slice a/p/n with
    # zero-cost leading-dim indexing (single copy here replaces three strided slices).
    feats = jnp.transpose(features, (1, 0, 2)).astype(jnp.float32)

    labels_i32 = labels.astype(jnp.int32)
    neg_labels_i32 = neg_labels.astype(jnp.int32)
    labels_col = labels_i32.reshape(B, 1)                                  # (B, 1)
    labels_row2 = jnp.concatenate([labels_i32, neg_labels_i32]).reshape(1, 2 * B)

    # Rough VMEM need (operands + normalized copies + fused (B,2B) tile + masks),
    # clamped to stay within every generation's physical VMEM.
    est_bytes = 6 * (3 * B * D * 4) + 8 * (B * 2 * B * 4) + (1 << 20)
    vmem_limit = int(min(64 * 2**20, max(8 * 2**20, est_bytes)))

    cost = pl.CostEstimate(
        flops=int(2 * B * (2 * B) * D + 12 * B * D),
        transcendentals=int(3 * B),
        bytes_accessed=int(3 * B * D * 4 + 3 * B * 4 + 4),
    )

    kernel = functools.partial(_triplet_kernel, margin=float(triplet_margin))
    out = pl.pallas_call(
        kernel,
        out_shape=jax.ShapeDtypeStruct((1, 1), jnp.float32),
        in_specs=[
            pl.BlockSpec(memory_space=pltpu.MemorySpace.VMEM),
            pl.BlockSpec(memory_space=pltpu.MemorySpace.VMEM),
            pl.BlockSpec(memory_space=pltpu.MemorySpace.VMEM),
        ],
        out_specs=pl.BlockSpec(memory_space=pltpu.MemorySpace.SMEM),
        compiler_params=pltpu.CompilerParams(vmem_limit_bytes=vmem_limit),
        cost_estimate=cost,
    )(feats, labels_col, labels_row2)
    return out[0, 0]


def _reference_loss(features, labels, neg_labels, margin):
    """NumPy re-implementation of the PyTorch module (loop-based, for checking)."""
    f = np.asarray(features, dtype=np.float64)
    lab = np.asarray(labels)
    nlab = np.asarray(neg_labels)
    B = f.shape[0]
    pos_pairs, neg_pairs = [], []
    for i in range(B):
        a, p, n = f[i, 0], f[i, 1], f[i, 2]
        pos_pairs.append((a, p))
        neg_pairs.append((a, n))
        for j in range(i + 1, B):
            if lab[i] == lab[j]:
                pos_pairs.append((a, f[j, 0]))
            else:
                neg_pairs.append((a, f[j, 0]))
            if lab[i] == nlab[j]:
                pos_pairs.append((a, f[j, 2]))
            else:
                neg_pairs.append((a, f[j, 2]))

    def mean_cos_dist(pairs):
        ds = []
        for x, y in pairs:
            nx = max(np.linalg.norm(x), 1e-8)
            ny = max(np.linalg.norm(y), 1e-8)
            ds.append(1.0 - float(np.dot(x, y)) / (nx * ny))
        return float(np.mean(ds))

    return max(mean_cos_dist(pos_pairs) - mean_cos_dist(neg_pairs) + margin, 0.0)


if __name__ == "__main__":
    key = jax.random.PRNGKey(0)
    k1, k2, k3 = jax.random.split(key, 3)

    B, D = 8, 32
    features = jax.random.normal(k1, (B, 3, D), dtype=jnp.float32)
    labels = jax.random.randint(k2, (B,), 0, 3, dtype=jnp.int32)
    neg_labels = jax.random.randint(k3, (B,), 0, 3, dtype=jnp.int32)

    loss = triplet_loss(features, labels, neg_labels, triplet_margin=5.0)
    loss = jax.block_until_ready(loss)

    ref = _reference_loss(features, labels, neg_labels, 5.0)
    # bf16 MXU operands (f32 accumulation) shift the pairwise cosines by O(1e-3);
    # tolerance loosened accordingly (per review note).
    assert np.allclose(float(loss), ref, rtol=1e-2, atol=2e-2), (float(loss), ref)

    print("KERNEL_OK")
</pallas_src>

<mosaic_0001>
module attributes {stable_mosaic.version = 11 : i64} {
  func.func @_triplet_kernel(%arg0: memref<3x8x32xf32, #tpu.memory_space<vmem>>, %arg1: memref<8x1xi32, #tpu.memory_space<vmem>>, %arg2: memref<1x16xi32, #tpu.memory_space<vmem>>, %arg3: memref<1x1xf32, #tpu.memory_space<smem>>) attributes {dimension_semantics = [], scalar_prefetch = 0 : i64, scratch_operands = 0 : i64, tpu.core_type = #tpu.core_type<tc>} {
    %c0 = arith.constant 0 : index
    %c0_0 = arith.constant 0 : index
    %c0_1 = arith.constant 0 : index
    %0 = vector.load %arg0[%c0, %c0_0, %c0_1] : memref<3x8x32xf32, #tpu.memory_space<vmem>>, vector<1x8x32xf32>
    %1 = vector.shape_cast %0 : vector<1x8x32xf32> to vector<8x32xf32>
    %c1 = arith.constant 1 : index
    %c0_2 = arith.constant 0 : index
    %c0_3 = arith.constant 0 : index
    %2 = vector.load %arg0[%c1, %c0_2, %c0_3] : memref<3x8x32xf32, #tpu.memory_space<vmem>>, vector<1x8x32xf32>
    %3 = vector.shape_cast %2 : vector<1x8x32xf32> to vector<8x32xf32>
    %c2 = arith.constant 2 : index
    %c0_4 = arith.constant 0 : index
    %c0_5 = arith.constant 0 : index
    %4 = vector.load %arg0[%c2, %c0_4, %c0_5] : memref<3x8x32xf32, #tpu.memory_space<vmem>>, vector<1x8x32xf32>
    %5 = vector.shape_cast %4 : vector<1x8x32xf32> to vector<8x32xf32>
    %6 = arith.mulf %1, %1 : vector<8x32xf32>
    %cst = arith.constant dense<0.000000e+00> : vector<8xf32>
    %7 = vector.multi_reduction <add>, %6, %cst [1] : vector<8x32xf32> to vector<8xf32>
    %8 = vector.shape_cast %7 : vector<8xf32> to vector<8x1xf32>
    %cst_6 = arith.constant 1.000000e-16 : f32
    %9 = vector.broadcast %cst_6 : f32 to vector<8x1xf32>
    %10 = arith.maximumf %8, %9 : vector<8x1xf32>
    %11 = math.rsqrt %10 : vector<8x1xf32>
    %12 = arith.mulf %3, %3 : vector<8x32xf32>
    %cst_7 = arith.constant dense<0.000000e+00> : vector<8xf32>
    %13 = vector.multi_reduction <add>, %12, %cst_7 [1] : vector<8x32xf32> to vector<8xf32>
    %14 = vector.shape_cast %13 : vector<8xf32> to vector<8x1xf32>
    %cst_8 = arith.constant 1.000000e-16 : f32
    %15 = vector.broadcast %cst_8 : f32 to vector<8x1xf32>
    %16 = arith.maximumf %14, %15 : vector<8x1xf32>
    %17 = math.rsqrt %16 : vector<8x1xf32>
    %18 = arith.mulf %5, %5 : vector<8x32xf32>
    %cst_9 = arith.constant dense<0.000000e+00> : vector<8xf32>
    %19 = vector.multi_reduction <add>, %18, %cst_9 [1] : vector<8x32xf32> to vector<8xf32>
    %20 = vector.shape_cast %19 : vector<8xf32> to vector<8x1xf32>
    %cst_10 = arith.constant 1.000000e-16 : f32
    %21 = vector.broadcast %cst_10 : f32 to vector<8x1xf32>
    %22 = arith.maximumf %20, %21 : vector<8x1xf32>
    %23 = math.rsqrt %22 : vector<8x1xf32>
    %24 = vector.broadcast %11 : vector<8x1xf32> to vector<8x32xf32>
    %25 = arith.mulf %1, %24 : vector<8x32xf32>
    %26 = vector.broadcast %17 : vector<8x1xf32> to vector<8x32xf32>
    %27 = arith.mulf %3, %26 : vector<8x32xf32>
    %28 = vector.broadcast %23 : vector<8x1xf32> to vector<8x32xf32>
    %29 = arith.mulf %5, %28 : vector<8x32xf32>
    %30 = arith.mulf %25, %27 : vector<8x32xf32>
    %31 = vector.shape_cast %30 : vector<8x32xf32> to vector<1x8x32xf32>
    %cst_11 = arith.constant dense<0.000000e+00> : vector<1xf32>
    %32 = vector.multi_reduction <add>, %31, %cst_11 [1, 2] : vector<1x8x32xf32> to vector<1xf32>
    %33 = vector.shape_cast %32 : vector<1xf32> to vector<1x1x1xf32>
    %34 = vector.extract %33[0, 0, 0] : f32 from vector<1x1x1xf32>
    %cst_12 = arith.constant 8.000000e+00 : f32
    %35 = arith.subf %cst_12, %34 : f32
    %36 = arith.mulf %25, %29 : vector<8x32xf32>
    %37 = vector.shape_cast %36 : vector<8x32xf32> to vector<1x8x32xf32>
    %cst_13 = arith.constant dense<0.000000e+00> : vector<1xf32>
    %38 = vector.multi_reduction <add>, %37, %cst_13 [1, 2] : vector<1x8x32xf32> to vector<1xf32>
    %39 = vector.shape_cast %38 : vector<1xf32> to vector<1x1x1xf32>
    %40 = vector.extract %39[0, 0, 0] : f32 from vector<1x1x1xf32>
    %cst_14 = arith.constant 8.000000e+00 : f32
    %41 = arith.subf %cst_14, %40 : f32
    %42 = tpu.concatenate %25, %29 in 0 : vector<8x32xf32>, vector<8x32xf32> -> vector<16x32xf32>
    %43 = arith.truncf %25 : vector<8x32xf32> to vector<8x32xbf16>
    %44 = arith.truncf %42 : vector<16x32xf32> to vector<16x32xbf16>
    %cst_15 = arith.constant dense<0.000000e+00> : vector<8x16xf32>
    %45 = tpu.matmul %43, %44, %cst_15 {dimension_numbers = #tpu.dot_dimension_numbers<[1], [1], [0], [0], [0, 0, 1, 0], [], []>} : vector<8x32xbf16>, vector<16x32xbf16>, vector<8x16xf32> -> vector<8x16xf32>
    %46 = tpu.iota {dimensions = array<i32: 0>} : vector<8x16xi32>
    %47 = tpu.iota {dimensions = array<i32: 1>} : vector<8x16xi32>
    %c8_i32 = arith.constant 8 : i32
    %48 = vector.broadcast %c8_i32 : i32 to vector<8x16xi32>
    %49 = arith.cmpi slt, %47, %48 : vector<8x16xi32>
    %c8_i32_16 = arith.constant 8 : i32
    %50 = vector.broadcast %c8_i32_16 : i32 to vector<8x16xi32>
    %51 = arith.subi %47, %50 : vector<8x16xi32>
    %52 = arith.select %49, %47, %51 : vector<8x16xi1>, vector<8x16xi32>
    %53 = arith.cmpi sgt, %52, %46 : vector<8x16xi32>
    %c0_17 = arith.constant 0 : index
    %c0_18 = arith.constant 0 : index
    %54 = vector.load %arg1[%c0_17, %c0_18] : memref<8x1xi32, #tpu.memory_space<vmem>>, vector<8x1xi32>
    %c0_19 = arith.constant 0 : index
    %c0_20 = arith.constant 0 : index
    %55 = vector.load %arg2[%c0_19, %c0_20] : memref<1x16xi32, #tpu.memory_space<vmem>>, vector<1x16xi32>
    %56 = vector.broadcast %54 : vector<8x1xi32> to vector<8x16xi32>
    %57 = vector.broadcast %55 : vector<1x16xi32> to vector<8x16xi32>
    %58 = arith.cmpi eq, %56, %57 : vector<8x16xi32>
    %59 = arith.andi %53, %58 : vector<8x16xi1>
    %cst_21 = arith.constant 0.000000e+00 : f32
    %60 = vector.broadcast %cst_21 : f32 to vector<8x16xf32>
    %61 = arith.select %53, %45, %60 : vector<8x16xi1>, vector<8x16xf32>
    %62 = vector.shape_cast %61 : vector<8x16xf32> to vector<1x8x16xf32>
    %cst_22 = arith.constant dense<0.000000e+00> : vector<1xf32>
    %63 = vector.multi_reduction <add>, %62, %cst_22 [1, 2] : vector<1x8x16xf32> to vector<1xf32>
    %64 = vector.shape_cast %63 : vector<1xf32> to vector<1x1x1xf32>
    %65 = vector.extract %64[0, 0, 0] : f32 from vector<1x1x1xf32>
    %cst_23 = arith.constant 0.000000e+00 : f32
    %66 = vector.broadcast %cst_23 : f32 to vector<8x16xf32>
    %67 = arith.select %59, %45, %66 : vector<8x16xi1>, vector<8x16xf32>
    %68 = vector.shape_cast %67 : vector<8x16xf32> to vector<1x8x16xf32>
    %cst_24 = arith.constant dense<0.000000e+00> : vector<1xf32>
    %69 = vector.multi_reduction <add>, %68, %cst_24 [1, 2] : vector<1x8x16xf32> to vector<1xf32>
    %70 = vector.shape_cast %69 : vector<1xf32> to vector<1x1x1xf32>
    %71 = vector.extract %70[0, 0, 0] : f32 from vector<1x1x1xf32>
    %72 = arith.extui %59 : vector<8x16xi1> to vector<8x16xi32>
    %73 = arith.sitofp %72 : vector<8x16xi32> to vector<8x16xf32>
    %74 = vector.shape_cast %73 : vector<8x16xf32> to vector<1x8x16xf32>
    %cst_25 = arith.constant dense<0.000000e+00> : vector<1xf32>
    %75 = vector.multi_reduction <add>, %74, %cst_25 [1, 2] : vector<1x8x16xf32> to vector<1xf32>
    %76 = vector.shape_cast %75 : vector<1xf32> to vector<1x1x1xf32>
    %77 = vector.extract %76[0, 0, 0] : f32 from vector<1x1x1xf32>
    %cst_26 = arith.constant 5.600000e+01 : f32
    %78 = arith.subf %cst_26, %77 : f32
    %79 = arith.subf %65, %71 : f32
    %80 = arith.subf %77, %71 : f32
    %81 = arith.addf %35, %80 : f32
    %82 = arith.subf %78, %79 : f32
    %83 = arith.addf %41, %82 : f32
    %cst_27 = arith.constant 8.000000e+00 : f32
    %84 = arith.addf %cst_27, %77 : f32
    %cst_28 = arith.constant 8.000000e+00 : f32
    %85 = arith.addf %cst_28, %78 : f32
    %86 = arith.divf %81, %84 : f32
    %87 = arith.divf %83, %85 : f32
    %88 = arith.subf %86, %87 : f32
    %cst_29 = arith.constant 5.000000e+00 : f32
    %89 = arith.addf %88, %cst_29 : f32
    %cst_30 = arith.constant 0.000000e+00 : f32
    %90 = arith.maximumf %89, %cst_30 : f32
    %c0_31 = arith.constant 0 : index
    %c0_32 = arith.constant 0 : index
    %91 = memref.load %arg3[%c0_31, %c0_32] : memref<1x1xf32, #tpu.memory_space<smem>>
    memref.store %90, %arg3[%c0_31, %c0_32] : memref<1x1xf32, #tpu.memory_space<smem>>
    return
  }
}

</mosaic_0001>

<llo_original>
// kernel: tpu_custom_call.1
$region0: #{tpu_custom_call.1}
  #allocation0 [shape = 'u32[]', space=smem, size = 0x4, offset = 0x4, fixed_abs, tag = 'smem constant byte address 0x4 - core index']
  #allocation1 [shape = 'u32[144,128]{1,0:T(1,128)}', space=vmem, size = 0x12000, scoped, tag = 'internal scratch']
  %s0 = inlined_call_operand.hbm [shape: f32[3,8,32], index: 0, kind: input, shape index: {}]
  %s1 = inlined_call_operand.vmem [shape: s32[8,1], index: 1, kind: input, shape index: {}]
  %s2 = inlined_call_operand.vmem [shape: s32[1,16], index: 2, kind: input, shape index: {}]
  %s3 = inlined_call_operand.hbm [shape: f32[1,1], index: 3, kind: output, shape index: {}]
  %s4 = sld [smem:[#allocation0]]
  $region26: #{tpu_custom_call.1} parent=0
    _
  %s6 = ssub.s32 1, %s4
  %s7 = scalar_select 0, %s6, %s4
  $region1: #{tpu_custom_call.1} parent=0
    #allocation2 [shape = 'u8[12288]{0}', space=vmem, size = 0x3000, scoped, tag = 'input window, operand 0, single buffered']
    #allocation3 [shape = 's32[1]{0}', space=sflag, size = 0x4, scoped, tag = 'scoped memory for tpu_custom_call.1']
    #allocation4 [shape = 's32[1]{0}', space=sflag, size = 0x4, scoped, tag = 'scoped memory for tpu_custom_call.1']
    #allocation5 [shape = 'u8[512]{0}', space=smem, size = 0x200, scoped, tag = 'output window, operand 0, single buffered']
    %8 = vsyncpa [#allocation3], 0
    %9 = vsyncpa [#allocation4], 0
    // Predicated region
    $region2: #{tpu_custom_call.1} parent=1 // pred_check
      _
    $region3: #{tpu_custom_call.1} parent=1 // pred_check_branch
      %11 = sbr.rel (0) target = $region5
    $region4: #{tpu_custom_call.1} parent=1 // pred_region
      %s13 = ssub.s32 384, 384
      %14 = vsyncadd [#allocation3], %s13
      %s15 = sshll.u32 [#allocation2], 4
      %s16 = int_to_ptr.vmem [resolvable:$true] %s15
      %21 = dma.hbm_to_vmem [thread:$0]  %s0, 384, %s16, [#allocation3], 128, 128, 8
    $region5: #{tpu_custom_call.1} parent=1 // pred_fallthru
      _
    // Predicated region
    $region6: #{tpu_custom_call.1} parent=1 // pred_check
      _
    $region7: #{tpu_custom_call.1} parent=1 // pred_check_branch
      %23 = sbr.rel (0) target = $region9
    $region8: #{tpu_custom_call.1} parent=1 // pred_region
      _
    $region9: #{tpu_custom_call.1} parent=1 // pred_fallthru
      _
    // Predicated region
    $region10: #{tpu_custom_call.1} parent=1 // pred_check
      _
    $region11: #{tpu_custom_call.1} parent=1 // pred_check_branch
      %25 = sbr.rel (0) target = $region13
    $region12: #{tpu_custom_call.1} parent=1 // pred_region
      _
    $region13: #{tpu_custom_call.1} parent=1 // pred_fallthru
      _
    // Predicated region
    $region14: #{tpu_custom_call.1} parent=1 // pred_check
      _
    $region15: #{tpu_custom_call.1} parent=1 // pred_check_branch
      %27 = sbr.rel (0) target = $region17
    $region16: #{tpu_custom_call.1} parent=1 // pred_region
      %28 = dma.done [#allocation3], 384
    $region17: #{tpu_custom_call.1} parent=1 // pred_fallthru
      _
    %v30 = vld [vmem:[#allocation2] sm:$0xff]
    %s31 = scalar_lea.vmem [#allocation2], 8
    %v32 = vld [vmem:[%s31] sm:$0xff]
    %s33 = scalar_lea.vmem [#allocation2], 16
    %v34 = vld [vmem:[%s33] sm:$0xff]
    %v35 = vmul.f32 %v30, %v30
    %vm36 = vcmask 261120
    %v37 = vsel %vm36, %v35, 0.0
    %38 = vadd.xlane.f32.xlu0 %v37
    %v39 = vpop.xlane.xlu0 %38
    %v40 = vmax.f32 %v39, 1e-16
    %v41 = vrsqrt.pop %v40
    %v42 = vmul.f32 %v32, %v32
    %v43 = vsel %vm36, %v42, 0.0
    %44 = vadd.xlane.f32.xlu0 %v43
    %v45 = vpop.xlane.xlu0 %44
    %v46 = vmax.f32 %v45, 1e-16
    %v47 = vrsqrt.pop %v46
    %v48 = vmul.f32 %v34, %v34
    %v49 = vsel %vm36, %v48, 0.0
    %50 = vadd.xlane.f32.xlu0 %v49
    %v51 = vpop.xlane.xlu0 %50
    %v52 = vmax.f32 %v51, 1e-16
    %v53 = vrsqrt.pop %v52
    %v54 = vmul.f32 %v30, %v41
    %v55 = vmul.f32 %v32, %v47
    %v56 = vmul.f32 %v34, %v53
    %v57 = vmul.f32 %v54, %v55
    %v58 = vsel %vm36, %v57, 0.0
    %59 = vadd.xlane.f32.xlu0 %v58
    %v60 = vpop.xlane.xlu0 %59
    %v61 = vrot.slane %v60, 4
    %v62 = vadd.f32 %v60, %v61
    %v63 = vrot.slane %v62, 2
    %v64 = vadd.f32 %v62, %v63
    %v65 = vrot.slane %v64, 1
    %v66 = vadd.f32 %v64, %v65
    %s67 = vtos %v66
    %s68 = ssub.f32 8.0, %s67
    %v69 = vmul.f32 %v54, %v56
    %v70 = vsel %vm36, %v69, 0.0
    %71 = vadd.xlane.f32.xlu0 %v70
    %v72 = vpop.xlane.xlu0 %71
    %v73 = vrot.slane %v72, 4
    %v74 = vadd.f32 %v72, %v73
    %v75 = vrot.slane %v74, 2
    %v76 = vadd.f32 %v74, %v75
    %v77 = vrot.slane %v76, 1
    %v78 = vadd.f32 %v76, %v77
    %s79 = vtos %v78
    %s80 = ssub.f32 8.0, %s79
    %v81 = vpack.c.bf16 %v54, %v54
    %v82 = vpack.c.bf16 %v56, %v54
    %v84 = vsel %vm36, %v81, 0
    %v87 = vsel %vm36, %v82, 0
    %89 = vmatprep.subr.bf16.mxu0 0
    %90 = vmatpush1.bf16.xpose.msra.mxu0 0
    %91 = vmatprep.subr.bf16.mxu0 0
    %92 = vmatpush1.bf16.xpose.msra.mxu0 0
    %93 = vmatprep.subr.bf16.mxu0 0
    %94 = vmatpush1.bf16.xpose.msra.mxu0 0
    %95 = vmatprep.subr.bf16.mxu0 0
    %96 = vmatpush1.bf16.xpose.msra.mxu0 0
    %97 = vmatprep.subr.bf16.mxu0 0
    %98 = vmatpush1.bf16.xpose.msra.mxu0 0
    %99 = vmatprep.subr.bf16.mxu0 0
    %100 = vmatpush1.bf16.xpose.msra.mxu0 0
    %101 = vmatprep.subr.bf16.mxu0 0
    %102 = vmatpush1.bf16.xpose.msra.mxu0 0
    %103 = vmatprep.subr.bf16.mxu0 0
    %104 = vmatpush1.bf16.xpose.msra.mxu0 %v87
    %105 = vmatprep.subr.bf16.mxu0 0
    %106 = vmatpush2.bf16.xpose.msra.mxu0 0
    %107 = vmatprep.subr.bf16.mxu0 0
    %108 = vmatpush2.bf16.xpose.msra.mxu0 0
    %109 = vmatprep.subr.bf16.mxu0 0
    %110 = vmatpush2.bf16.xpose.msra.mxu0 0
    %111 = vmatprep.subr.bf16.mxu0 0
    %112 = vmatpush2.bf16.xpose.msra.mxu0 0
    %113 = vmatprep.subr.bf16.mxu0 0
    %114 = vmatpush2.bf16.xpose.msra.mxu0 0
    %115 = vmatprep.subr.bf16.mxu0 0
    %116 = vmatpush2.bf16.xpose.msra.mxu0 0
    %117 = vmatprep.subr.bf16.mxu0 0
    %118 = vmatpush2.bf16.xpose.msra.mxu0 0
    %119 = vmatprep.subr.bf16.mxu0 0
    %120 = vmatpush2.bf16.xpose.msra.mxu0 0
    %121 = vmatprep.mubr.bf16.mxu0 0
    %122 = vmatmul.mubr.bf16.gmra.mxu0 %v84
    %v123 = vpop.f32.mrf.mxu0
    %v124 = vadd.f32 0.0, %v123
    %v125 = vpop.f32.mrf.mxu0
    %v126 = vpop.f32.mrf.mxu0
    %v127 = vpop.f32.mrf.mxu0
    %128 = vdwg.mxu0
    %v129 = vlaneseq
    %v130 = vshrl.u32 %v129, 7
    %v131 = vlaneseq
    %v132 = vand.u32 %v131, 127
    %vm133 = vcmp.lt.s32.totalorder %v132, 8
    %v134 = vsub.s32 %v132, 8
    %v135 = vsel %vm133, %v132, %v134
    %vm136 = vcmp.gt.s32.totalorder %v135, %v130
    %v137 = vld [vmem:[%s1] sm:$0xff]
    %v138 = vld [vmem:[%s2] sm:$0x1]
    %139 = vset.pattern.permute.xlu0 0
    %140 = vperm.xlu0 %139, %v137
    %v141 = vpop.permute.xlu0 %140
    %v142 = vlaneseq
    %v143 = vshrl.u32 %v142, 7
    %v144 = vsub.s32 0, %v143
    %v145 = vrot.slane %v138, %v144
    %vm146 = vcmp.eq.s32.totalorder %v141, %v145
    %vm147 = vmand %vm136, %vm146
    %v148 = vsel %vm136, %v124, 0.0
    %vm149 = vcmask 130048
    %v150 = vsel %vm149, %v148, 0.0
    %151 = vadd.xlane.f32.xlu0 %v150
    %v152 = vpop.xlane.xlu0 %151
    %v153 = vrot.slane %v152, 4
    %v154 = vadd.f32 %v152, %v153
    %v155 = vrot.slane %v154, 2
    %v156 = vadd.f32 %v154, %v155
    %v157 = vrot.slane %v156, 1
    %v158 = vadd.f32 %v156, %v157
    %s159 = vtos %v158
    %v160 = vsel %vm147, %v124, 0.0
    %v161 = vsel %vm149, %v160, 0.0
    %162 = vadd.xlane.f32.xlu0 %v161
    %v163 = vpop.xlane.xlu0 %162
    %v164 = vrot.slane %v163, 4
    %v165 = vadd.f32 %v163, %v164
    %v166 = vrot.slane %v165, 2
    %v167 = vadd.f32 %v165, %v166
    %v168 = vrot.slane %v167, 1
    %v169 = vadd.f32 %v167, %v168
    %s170 = vtos %v169
    %v171 = vsel %vm147, 1, 0
    %v172 = vcvt.s32.f32 %v171
    %v173 = vsel %vm149, %v172, 0.0
    %174 = vadd.xlane.f32.xlu0 %v173
    %v175 = vpop.xlane.xlu0 %174
    %v176 = vrot.slane %v175, 4
    %v177 = vadd.f32 %v175, %v176
    %v178 = vrot.slane %v177, 2
    %v179 = vadd.f32 %v177, %v178
    %v180 = vrot.slane %v179, 1
    %v181 = vadd.f32 %v179, %v180
    %s182 = vtos %v181
    %s183 = ssub.f32 56.0, %s182
    %s184 = ssub.f32 %s159, %s170
    %s185 = ssub.f32 %s182, %s170
    %s186 = sadd.f32 %s68, %s185
    %s187 = ssub.f32 %s183, %s184
    %s188 = sadd.f32 %s80, %s187
    %s189 = sadd.f32 %s182, 8.0
    %s190 = sadd.f32 %s183, 8.0
    %v191 = vstv %s189
    %v192 = vrcp.pop %v191
    %s193 = vtos %v192
    %s194 = smul.f32 %s186, %s193
    %v195 = vstv %s190
    %v196 = vrcp.pop %v195
    %s197 = vtos %v196
    %s198 = smul.f32 %s188, %s197
    %s199 = ssub.f32 %s194, %s198
    %s200 = sadd.f32 %s199, 5.0
    %s201 = smax.f32 %s200, 0.0
    %s202 = scalar_lea.smem [#allocation5], 0
    %203 = sst [smem:[%s202]] %s201
    // Predicated region
    $region18: #{tpu_custom_call.1} parent=1 // pred_check
      _
    $region19: #{tpu_custom_call.1} parent=1 // pred_check_branch
      %205 = sbr.rel (0) target = $region21
    $region20: #{tpu_custom_call.1} parent=1 // pred_region
      %s207 = ssub.s32 16, 16
      %208 = vsyncadd [#allocation4], %s207
      %211 = dma.smem_to_hbm [#allocation5], 16, %s3, [#allocation4]
    $region21: #{tpu_custom_call.1} parent=1 // pred_fallthru
      _
    // Predicated region
    $region22: #{tpu_custom_call.1} parent=1 // pred_check
      _
    $region23: #{tpu_custom_call.1} parent=1 // pred_check_branch
      %213 = sbr.rel (0) target = $region25
    $region24: #{tpu_custom_call.1} parent=1 // pred_region
      %214 = dma.done [#allocation4], 16
    $region25: #{tpu_custom_call.1} parent=1 // pred_fallthru
      _
    %215 = sfence
    %216 = vsyncpa [#allocation3], 1
    %217 = vsyncpa [#allocation4], 1

</llo_original>
